<compile_context>
chip_gen: v5e
topology: v5e:2x2
jax: 0.10.0
libtpu: 0.0.40
codegen_flags: <defaults>
</compile_context>

<pallas_src>
import jax
import jax.numpy as jnp
from jax.experimental import pallas as pl
from jax.experimental.pallas import tpu as pltpu


def _round_up(x, m):
    return (x + m - 1) // m * m


def othello_mlp_kernel(x_ref, w1_ref, b1_ref, w2_ref, b2_ref, w3_ref, b3_ref,
                       o_ref):
    # fc1 + relu : bf16 MXU operands, f32 accumulate / bias / ReLU.
    h1 = jnp.dot(x_ref[...], w1_ref[...],
                 preferred_element_type=jnp.float32) + b1_ref[...]
    h1 = jnp.maximum(h1, 0.0).astype(jnp.bfloat16)
    # fc2 + relu
    h2 = jnp.dot(h1, w2_ref[...],
                 preferred_element_type=jnp.float32) + b2_ref[...]
    h2 = jnp.maximum(h2, 0.0).astype(jnp.bfloat16)
    # fc3 (linear head, no activation)
    o_ref[...] = (jnp.dot(h2, w3_ref[...],
                          preferred_element_type=jnp.float32)
                  + b3_ref[...]).astype(o_ref.dtype)


def othello_forward(x, params, *, block_b=512):
    """x: [B, 64] float32. params: dict of w1,b1,w2,b2,w3,b3 (f32).

    Returns [B, 64] float32. Batch is tiled into blocks of up to `block_b`
    rows (multiple of 16); B is zero-padded up to the tile and sliced back.
    """
    B, F = x.shape
    assert F == 64, "Othello board input must have 64 features"

    # Batch tile: multiple of 16 (bf16 sublane packing / MXU M-fill), capped.
    tb = min(block_b, _round_up(B, 16))
    tb = _round_up(tb, 16)
    Bp = _round_up(B, tb)

    xp = x if Bp == B else jnp.pad(x, ((0, Bp - B), (0, 0)))

    # bf16 MXU operands (tiny weights; under jit these casts are one-time /
    # fused). Biases stay f32 so the adds happen in f32.
    xb = xp.astype(jnp.bfloat16)
    w1 = params["w1"].astype(jnp.bfloat16)
    w2 = params["w2"].astype(jnp.bfloat16)
    w3 = params["w3"].astype(jnp.bfloat16)
    b1 = params["b1"].astype(jnp.float32)
    b2 = params["b2"].astype(jnp.float32)
    b3 = params["b3"].astype(jnp.float32)

    grid = (Bp // tb,)

    const = lambda shape: pl.BlockSpec(shape, lambda i: (0,) * len(shape))

    out = pl.pallas_call(
        othello_mlp_kernel,
        out_shape=jax.ShapeDtypeStruct((Bp, 64), jnp.float32),
        grid=grid,
        in_specs=[
            pl.BlockSpec((tb, 64), lambda i: (i, 0)),   # x tile (pipelined)
            const((64, 128)),  const((1, 128)),         # w1, b1 (resident)
            const((128, 128)), const((1, 128)),         # w2, b2 (resident)
            const((128, 64)),  const((1, 64)),          # w3, b3 (resident)
        ],
        out_specs=pl.BlockSpec((tb, 64), lambda i: (i, 0)),
        compiler_params=pltpu.CompilerParams(
            dimension_semantics=("parallel",)),
    )(xb, w1, b1, w2, b2, w3, b3)

    return out[:B]


def init_params(key):
    """Deterministic init matching PyTorch nn.Linear default:
    U(-1/sqrt(fan_in), 1/sqrt(fan_in)) for both weight and bias."""
    def linear(key, fan_in, fan_out):
        kw, kb = jax.random.split(key)
        bound = 1.0 / jnp.sqrt(fan_in)
        # stored as [in, out] so the kernel does x @ W
        w = jax.random.uniform(kw, (fan_in, fan_out), jnp.float32,
                               minval=-bound, maxval=bound)
        b = jax.random.uniform(kb, (1, fan_out), jnp.float32,
                               minval=-bound, maxval=bound)
        return w, b

    k1, k2, k3 = jax.random.split(key, 3)
    w1, b1 = linear(k1, 64, 128)
    w2, b2 = linear(k2, 128, 128)
    w3, b3 = linear(k3, 128, 64)
    return dict(w1=w1, b1=b1, w2=w2, b2=b2, w3=w3, b3=b3)


def reference_forward(x, p):
    h1 = jnp.maximum(x @ p["w1"] + p["b1"], 0.0)
    h2 = jnp.maximum(h1 @ p["w2"] + p["b2"], 0.0)
    return h2 @ p["w3"] + p["b3"]


if __name__ == "__main__":
    key = jax.random.PRNGKey(0)
    kp, kx = jax.random.split(key)
    params = init_params(kp)

    # Small batch of flattened 8x8 Othello boards (64 features each).
    # B=40 with block_b=16 exercises padding (40 -> 48) and a 3-step grid.
    B = 40
    x = jax.random.normal(kx, (B, 64), jnp.float32)

    out = othello_forward(x, params, block_b=16)
    out = jax.block_until_ready(out)

    ref = reference_forward(x, params)
    assert out.shape == (B, 64)
    # bf16 MXU operands with f32 accumulation -> loosened tolerance vs f32 ref.
    assert jnp.allclose(out, ref, atol=3e-2, rtol=3e-2), (
        float(jnp.max(jnp.abs(out - ref))))

    print("KERNEL_OK")
</pallas_src>

<mosaic_0001>
module attributes {stable_mosaic.version = 11 : i64} {
  func.func @othello_mlp_kernel(%arg0: i32, %arg1: memref<16x64xbf16, #tpu.memory_space<vmem>>, %arg2: memref<64x128xbf16, #tpu.memory_space<vmem>>, %arg3: memref<1x128xf32, #tpu.memory_space<vmem>>, %arg4: memref<128x128xbf16, #tpu.memory_space<vmem>>, %arg5: memref<1x128xf32, #tpu.memory_space<vmem>>, %arg6: memref<128x64xbf16, #tpu.memory_space<vmem>>, %arg7: memref<1x64xf32, #tpu.memory_space<vmem>>, %arg8: memref<16x64xf32, #tpu.memory_space<vmem>>) attributes {dimension_semantics = [#tpu.dimension_semantics<parallel>], iteration_bounds = array<i64: 3>, scalar_prefetch = 0 : i64, scratch_operands = 0 : i64, tpu.core_type = #tpu.core_type<tc>, window_params = [{transform_indices = @transform_0, window_bounds = array<i64: 16, 64>}, {pipeline_mode = #tpu.pipeline_mode<synchronous>, transform_indices = @transform_1, window_bounds = array<i64: 64, 128>}, {pipeline_mode = #tpu.pipeline_mode<synchronous>, transform_indices = @transform_2, window_bounds = array<i64: 1, 128>}, {pipeline_mode = #tpu.pipeline_mode<synchronous>, transform_indices = @transform_3, window_bounds = array<i64: 128, 128>}, {pipeline_mode = #tpu.pipeline_mode<synchronous>, transform_indices = @transform_4, window_bounds = array<i64: 1, 128>}, {pipeline_mode = #tpu.pipeline_mode<synchronous>, transform_indices = @transform_5, window_bounds = array<i64: 128, 64>}, {pipeline_mode = #tpu.pipeline_mode<synchronous>, transform_indices = @transform_6, window_bounds = array<i64: 1, 64>}, {transform_indices = @transform_7, window_bounds = array<i64: 16, 64>}]} {
    %c0 = arith.constant 0 : index
    %c0_0 = arith.constant 0 : index
    %0 = vector.load %arg1[%c0, %c0_0] : memref<16x64xbf16, #tpu.memory_space<vmem>>, vector<16x64xbf16>
    %c0_1 = arith.constant 0 : index
    %c0_2 = arith.constant 0 : index
    %1 = vector.load %arg2[%c0_1, %c0_2] : memref<64x128xbf16, #tpu.memory_space<vmem>>, vector<64x128xbf16>
    %cst = arith.constant dense<0.000000e+00> : vector<16x128xf32>
    %2 = tpu.matmul %0, %1, %cst {dimension_numbers = #tpu.dot_dimension_numbers<[1], [0], [0], [1], [0, 0, 1, 1], [], []>} : vector<16x64xbf16>, vector<64x128xbf16>, vector<16x128xf32> -> vector<16x128xf32>
    %c0_3 = arith.constant 0 : index
    %c0_4 = arith.constant 0 : index
    %3 = vector.load %arg3[%c0_3, %c0_4] : memref<1x128xf32, #tpu.memory_space<vmem>>, vector<1x128xf32>
    %4 = vector.broadcast %3 : vector<1x128xf32> to vector<16x128xf32>
    %5 = arith.addf %2, %4 : vector<16x128xf32>
    %cst_5 = arith.constant 0.000000e+00 : f32
    %6 = vector.broadcast %cst_5 : f32 to vector<16x128xf32>
    %7 = arith.maximumf %5, %6 : vector<16x128xf32>
    %8 = arith.truncf %7 : vector<16x128xf32> to vector<16x128xbf16>
    %c0_6 = arith.constant 0 : index
    %c0_7 = arith.constant 0 : index
    %9 = vector.load %arg4[%c0_6, %c0_7] : memref<128x128xbf16, #tpu.memory_space<vmem>>, vector<128x128xbf16>
    %cst_8 = arith.constant dense<0.000000e+00> : vector<16x128xf32>
    %10 = tpu.matmul %8, %9, %cst_8 {dimension_numbers = #tpu.dot_dimension_numbers<[1], [0], [0], [1], [0, 0, 1, 1], [], []>} : vector<16x128xbf16>, vector<128x128xbf16>, vector<16x128xf32> -> vector<16x128xf32>
    %c0_9 = arith.constant 0 : index
    %c0_10 = arith.constant 0 : index
    %11 = vector.load %arg5[%c0_9, %c0_10] : memref<1x128xf32, #tpu.memory_space<vmem>>, vector<1x128xf32>
    %12 = vector.broadcast %11 : vector<1x128xf32> to vector<16x128xf32>
    %13 = arith.addf %10, %12 : vector<16x128xf32>
    %cst_11 = arith.constant 0.000000e+00 : f32
    %14 = vector.broadcast %cst_11 : f32 to vector<16x128xf32>
    %15 = arith.maximumf %13, %14 : vector<16x128xf32>
    %16 = arith.truncf %15 : vector<16x128xf32> to vector<16x128xbf16>
    %c0_12 = arith.constant 0 : index
    %c0_13 = arith.constant 0 : index
    %17 = vector.load %arg6[%c0_12, %c0_13] : memref<128x64xbf16, #tpu.memory_space<vmem>>, vector<128x64xbf16>
    %cst_14 = arith.constant dense<0.000000e+00> : vector<16x64xf32>
    %18 = tpu.matmul %16, %17, %cst_14 {dimension_numbers = #tpu.dot_dimension_numbers<[1], [0], [0], [1], [0, 0, 1, 1], [], []>} : vector<16x128xbf16>, vector<128x64xbf16>, vector<16x64xf32> -> vector<16x64xf32>
    %c0_15 = arith.constant 0 : index
    %c0_16 = arith.constant 0 : index
    %19 = vector.load %arg7[%c0_15, %c0_16] : memref<1x64xf32, #tpu.memory_space<vmem>>, vector<1x64xf32>
    %20 = vector.broadcast %19 : vector<1x64xf32> to vector<16x64xf32>
    %21 = arith.addf %18, %20 : vector<16x64xf32>
    %c0_17 = arith.constant 0 : index
    %c0_18 = arith.constant 0 : index
    %22 = vector.load %arg8[%c0_17, %c0_18] : memref<16x64xf32, #tpu.memory_space<vmem>>, vector<16x64xf32>
    tpu.vector_store %arg8[%c0_17, %c0_18], %21 {strides = array<i32>} : memref<16x64xf32, #tpu.memory_space<vmem>>, vector<16x64xf32>,
    return
  }
  func.func @transform_0(%arg0: i32) -> (i32, i32) {
    %c0_i32 = arith.constant 0 : i32
    %c0_i32_0 = arith.constant 0 : i32
    return %arg0, %c0_i32 : i32, i32
  }
  func.func @transform_1(%arg0: i32) -> (i32, i32) {
    %c0_i32 = arith.constant 0 : i32
    %c0_i32_0 = arith.constant 0 : i32
    %c0_i32_1 = arith.constant 0 : i32
    return %c0_i32, %c0_i32_0 : i32, i32
  }
  func.func @transform_2(%arg0: i32) -> (i32, i32) {
    %c0_i32 = arith.constant 0 : i32
    %c0_i32_0 = arith.constant 0 : i32
    %c0_i32_1 = arith.constant 0 : i32
    return %c0_i32, %c0_i32_0 : i32, i32
  }
  func.func @transform_3(%arg0: i32) -> (i32, i32) {
    %c0_i32 = arith.constant 0 : i32
    %c0_i32_0 = arith.constant 0 : i32
    %c0_i32_1 = arith.constant 0 : i32
    return %c0_i32, %c0_i32_0 : i32, i32
  }
  func.func @transform_4(%arg0: i32) -> (i32, i32) {
    %c0_i32 = arith.constant 0 : i32
    %c0_i32_0 = arith.constant 0 : i32
    %c0_i32_1 = arith.constant 0 : i32
    return %c0_i32, %c0_i32_0 : i32, i32
  }
  func.func @transform_5(%arg0: i32) -> (i32, i32) {
    %c0_i32 = arith.constant 0 : i32
    %c0_i32_0 = arith.constant 0 : i32
    %c0_i32_1 = arith.constant 0 : i32
    return %c0_i32, %c0_i32_0 : i32, i32
  }
  func.func @transform_6(%arg0: i32) -> (i32, i32) {
    %c0_i32 = arith.constant 0 : i32
    %c0_i32_0 = arith.constant 0 : i32
    %c0_i32_1 = arith.constant 0 : i32
    return %c0_i32, %c0_i32_0 : i32, i32
  }
  func.func @transform_7(%arg0: i32) -> (i32, i32) {
    %c0_i32 = arith.constant 0 : i32
    %c0_i32_0 = arith.constant 0 : i32
    return %arg0, %c0_i32 : i32, i32
  }
}

</mosaic_0001>

<llo_original>
// kernel: tpu_custom_call.1
$region0: #{tpu_custom_call.1}
  #allocation0 [shape = 'u32[]', space=smem, size = 0x4, offset = 0x4, fixed_abs, tag = 'smem constant byte address 0x4 - core index']
  #allocation1 [shape = 'u32[72,128]{1,0:T(1,128)}', space=vmem, size = 0x9000, scoped, tag = 'internal scratch']
  %s0 = inlined_call_operand.hbm [shape: bf16[48,64], index: 0, kind: input, shape index: {}]
  %s1 = inlined_call_operand.vmem [shape: bf16[64,128], index: 1, kind: input, shape index: {}]
  %s2 = inlined_call_operand.vmem [shape: f32[1,128], index: 2, kind: input, shape index: {}]
  %s3 = inlined_call_operand.vmem [shape: bf16[128,128], index: 3, kind: input, shape index: {}]
  %s4 = inlined_call_operand.vmem [shape: f32[1,128], index: 4, kind: input, shape index: {}]
  %s5 = inlined_call_operand.vmem [shape: bf16[128,64], index: 5, kind: input, shape index: {}]
  %s6 = inlined_call_operand.vmem [shape: f32[1,64], index: 6, kind: input, shape index: {}]
  %s7 = inlined_call_operand.hbm [shape: f32[48,64], index: 7, kind: output, shape index: {}]
  %s8 = sld [smem:[#allocation0]]
  $region65: #{tpu_custom_call.1} parent=0
    _
  %s10 = ssub.s32 1, %s8
  %s11 = scalar_select 0, %s10, %s8
  $region1: #{tpu_custom_call.1} parent=0
    #allocation2 [shape = 'u8[8192]{0}', space=vmem, size = 0x2000, scoped, tag = 'input window, operand 0']
    #allocation3 [shape = 's32[2]{0}', space=sflag, size = 0x8, scoped, tag = 'scoped memory for tpu_custom_call.1']
    #allocation4 [shape = 's32[2]{0}', space=sflag, size = 0x8, scoped, tag = 'scoped memory for tpu_custom_call.1']
    #allocation5 [shape = 'u8[16384]{0}', space=vmem, size = 0x4000, scoped, tag = 'output window, operand 0']
    %12 = vsyncpa [#allocation3], 0
    %s13 = scalar_lea.sflag [#allocation3], 1
    %14 = vsyncpa %s13, 0
    %15 = vsyncpa [#allocation4], 0
    %s16 = scalar_lea.sflag [#allocation4], 1
    %17 = vsyncpa %s16, 0
    loop: start=0, step=1, limit=5
    $region2: #{tpu_custom_call.1} parent=1 // loop_pre_header
      _
    $region3: #{tpu_custom_call.1} parent=1 // loop_header
      %s19 = sphi 0, %s23
      %p20 = scmp.ge.s32.totalorder %s19, 5
      %s29 = sphi 0, %s31
      %s32 = sphi 0, %s29
      %s33 = sphi 0, %s32
      %s49 = sphi 0, %s33
      %s53 = sphi 0, %s53
      %s55 = sphi 0, %s53
      %s56 = sphi 0, %s55
      %s70 = sphi 0, %s56
      %s74 = sphi 0, %s74
      %s76 = sphi 0, %s74
      %s77 = sphi 0, %s76
      %s91 = sphi 0, %s77
      %s95 = sphi 0, %s95
      %s97 = sphi 0, %s95
      %s98 = sphi 0, %s97
      %s112 = sphi 0, %s98
      %s116 = sphi 0, %s116
      %s118 = sphi 0, %s116
      %s119 = sphi 0, %s118
      %s133 = sphi 0, %s119
      %s137 = sphi 0, %s137
      %s139 = sphi 0, %s137
      %s140 = sphi 0, %s139
      %s154 = sphi 0, %s140
      %s158 = sphi 0, %s158
      %s160 = sphi 0, %s158
      %s161 = sphi 0, %s160
      %s175 = sphi 0, %s161
      %s181 = sphi 0, %s183
      %s184 = sphi 0, %s181
      %s185 = sphi 0, %s184
      %s201 = sphi 0, %s185
    $region4: #{tpu_custom_call.1} parent=1 // loop_header_branch
      %22 = sbr.rel (%p20) target = $region8
    $region5: #{tpu_custom_call.1} parent=1 // loop_body
      %s24 = ssub.s32 %s19, 1
      %s25 = ssub.s32 %s19, 2
      %s26 = sadd.s32 %s19, 1
      %s27 = ssub.s32 %s19, %s26
      %p28 = scmp.eq.s32.totalorder %s27, 0
      %s30 = sadd.s32 %s29, 1
      %s31 = scalar_select %p28, %s29, %s30
      %p34 = pneg %p28
      %p35 = scmp.eq.s32.totalorder %s19, 2
      %p36 = por %p34, %p35
      %p37 = scmp.ne.s32.totalorder %s29, %s32
      %p38 = scmp.eq.s32.totalorder %s19, 0
      %p39 = por %p37, %p38
      %p40 = scmp.ne.s32.totalorder %s29, %s32
      %p41 = scmp.eq.s32.totalorder %s24, 2
      %p42 = por %p40, %p41
      %p43 = scmp.ne.s32.totalorder %s32, %s33
      %p44 = scmp.eq.s32.totalorder %s24, 0
      %p45 = por %p43, %p44
      %p46 = scmp.ne.s32.totalorder %s32, %s33
      %p47 = scmp.eq.s32.totalorder %s25, 2
      %p48 = por %p46, %p47
      %p50 = scmp.ne.s32.totalorder %s33, %s49
      %p51 = scmp.eq.s32.totalorder %s25, 0
      %p52 = por %p50, %p51
      %s54 = sadd.s32 %s53, 1
      %p57 = scmp.eq.s32.totalorder %s19, 2
      %p58 = scmp.ne.s32.totalorder %s53, %s55
      %p59 = scmp.eq.s32.totalorder %s19, 0
      %p60 = por %p58, %p59
      %p61 = scmp.ne.s32.totalorder %s53, %s55
      %p62 = scmp.eq.s32.totalorder %s24, 2
      %p63 = por %p61, %p62
      %p64 = scmp.ne.s32.totalorder %s55, %s56
      %p65 = scmp.eq.s32.totalorder %s24, 0
      %p66 = por %p64, %p65
      %p67 = scmp.ne.s32.totalorder %s55, %s56
      %p68 = scmp.eq.s32.totalorder %s25, 2
      %p69 = por %p67, %p68
      %p71 = scmp.ne.s32.totalorder %s56, %s70
      %p72 = scmp.eq.s32.totalorder %s25, 0
      %p73 = por %p71, %p72
      %s75 = sadd.s32 %s74, 1
      %p78 = scmp.eq.s32.totalorder %s19, 2
      %p79 = scmp.ne.s32.totalorder %s74, %s76
      %p80 = scmp.eq.s32.totalorder %s19, 0
      %p81 = por %p79, %p80
      %p82 = scmp.ne.s32.totalorder %s74, %s76
      %p83 = scmp.eq.s32.totalorder %s24, 2
      %p84 = por %p82, %p83
      %p85 = scmp.ne.s32.totalorder %s76, %s77
      %p86 = scmp.eq.s32.totalorder %s24, 0
      %p87 = por %p85, %p86
      %p88 = scmp.ne.s32.totalorder %s76, %s77
      %p89 = scmp.eq.s32.totalorder %s25, 2
      %p90 = por %p88, %p89
      %p92 = scmp.ne.s32.totalorder %s77, %s91
      %p93 = scmp.eq.s32.totalorder %s25, 0
      %p94 = por %p92, %p93
      %s96 = sadd.s32 %s95, 1
      %p99 = scmp.eq.s32.totalorder %s19, 2
      %p100 = scmp.ne.s32.totalorder %s95, %s97
      %p101 = scmp.eq.s32.totalorder %s19, 0
      %p102 = por %p100, %p101
      %p103 = scmp.ne.s32.totalorder %s95, %s97
      %p104 = scmp.eq.s32.totalorder %s24, 2
      %p105 = por %p103, %p104
      %p106 = scmp.ne.s32.totalorder %s97, %s98
      %p107 = scmp.eq.s32.totalorder %s24, 0
      %p108 = por %p106, %p107
      %p109 = scmp.ne.s32.totalorder %s97, %s98
      %p110 = scmp.eq.s32.totalorder %s25, 2
      %p111 = por %p109, %p110
      %p113 = scmp.ne.s32.totalorder %s98, %s112
      %p114 = scmp.eq.s32.totalorder %s25, 0
      %p115 = por %p113, %p114
      %s117 = sadd.s32 %s116, 1
      %p120 = scmp.eq.s32.totalorder %s19, 2
      %p121 = scmp.ne.s32.totalorder %s116, %s118
      %p122 = scmp.eq.s32.totalorder %s19, 0
      %p123 = por %p121, %p122
      %p124 = scmp.ne.s32.totalorder %s116, %s118
      %p125 = scmp.eq.s32.totalorder %s24, 2
      %p126 = por %p124, %p125
      %p127 = scmp.ne.s32.totalorder %s118, %s119
      %p128 = scmp.eq.s32.totalorder %s24, 0
      %p129 = por %p127, %p128
      %p130 = scmp.ne.s32.totalorder %s118, %s119
      %p131 = scmp.eq.s32.totalorder %s25, 2
      %p132 = por %p130, %p131
      %p134 = scmp.ne.s32.totalorder %s119, %s133
      %p135 = scmp.eq.s32.totalorder %s25, 0
      %p136 = por %p134, %p135
      %s138 = sadd.s32 %s137, 1
      %p141 = scmp.eq.s32.totalorder %s19, 2
      %p142 = scmp.ne.s32.totalorder %s137, %s139
      %p143 = scmp.eq.s32.totalorder %s19, 0
      %p144 = por %p142, %p143
      %p145 = scmp.ne.s32.totalorder %s137, %s139
      %p146 = scmp.eq.s32.totalorder %s24, 2
      %p147 = por %p145, %p146
      %p148 = scmp.ne.s32.totalorder %s139, %s140
      %p149 = scmp.eq.s32.totalorder %s24, 0
      %p150 = por %p148, %p149
      %p151 = scmp.ne.s32.totalorder %s139, %s140
      %p152 = scmp.eq.s32.totalorder %s25, 2
      %p153 = por %p151, %p152
      %p155 = scmp.ne.s32.totalorder %s140, %s154
      %p156 = scmp.eq.s32.totalorder %s25, 0
      %p157 = por %p155, %p156
      %s159 = sadd.s32 %s158, 1
      %p162 = scmp.eq.s32.totalorder %s19, 2
      %p163 = scmp.ne.s32.totalorder %s158, %s160
      %p164 = scmp.eq.s32.totalorder %s19, 0
      %p165 = por %p163, %p164
      %p166 = scmp.ne.s32.totalorder %s158, %s160
      %p167 = scmp.eq.s32.totalorder %s24, 2
      %p168 = por %p166, %p167
      %p169 = scmp.ne.s32.totalorder %s160, %s161
      %p170 = scmp.eq.s32.totalorder %s24, 0
      %p171 = por %p169, %p170
      %p172 = scmp.ne.s32.totalorder %s160, %s161
      %p173 = scmp.eq.s32.totalorder %s25, 2
      %p174 = por %p172, %p173
      %p176 = scmp.ne.s32.totalorder %s161, %s175
      %p177 = scmp.eq.s32.totalorder %s25, 0
      %p178 = por %p176, %p177
      %s179 = ssub.s32 %s19, %s26
      %p180 = scmp.eq.s32.totalorder %s179, 0
      %s182 = sadd.s32 %s181, 1
      %s183 = scalar_select %p180, %s181, %s182
      %p186 = pneg %p180
      %p187 = scmp.eq.s32.totalorder %s19, 2
      %p188 = por %p186, %p187
      %p189 = scmp.ne.s32.totalorder %s181, %s184
      %p190 = scmp.eq.s32.totalorder %s19, 0
      %p191 = por %p189, %p190
      %p192 = scmp.ne.s32.totalorder %s181, %s184
      %p193 = scmp.eq.s32.totalorder %s24, 2
      %p194 = por %p192, %p193
      %p195 = scmp.ne.s32.totalorder %s184, %s185
      %p196 = scmp.eq.s32.totalorder %s24, 0
      %p197 = por %p195, %p196
      %p198 = scmp.ne.s32.totalorder %s184, %s185
      %p199 = scmp.eq.s32.totalorder %s25, 2
      %p200 = por %p198, %p199
      %p202 = scmp.ne.s32.totalorder %s185, %s201
      %p203 = scmp.eq.s32.totalorder %s25, 0
      %p204 = por %p202, %p203
      %p205 = scmp.le.s32.totalorder 1, %s19
      %p206 = scmp.lt.s32.totalorder %s19, 4
      %p207 = pnand %p205, %p206
      %p208 = pneg %p207
      // Predicated region
      $region9: #{tpu_custom_call.1} parent=5 // pred_check
        _
      $region10: #{tpu_custom_call.1} parent=5 // pred_check_branch
        %210 = sbr.rel (%p207) target = $region12
      $region11: #{tpu_custom_call.1} parent=5 // pred_region
        %s211 = ssub.s32 %s19, 1
        // Predicated region
        $region13: #{tpu_custom_call.1} parent=11 // pred_check
          %p212 = pneg %p66
        $region14: #{tpu_custom_call.1} parent=11 // pred_check_branch
          %214 = sbr.rel (%p212) target = $region16
        $region15: #{tpu_custom_call.1} parent=11 // pred_region
          _
        $region16: #{tpu_custom_call.1} parent=11 // pred_fallthru
          _
        // Predicated region
        $region17: #{tpu_custom_call.1} parent=11 // pred_check
          %p215 = pneg %p87
        $region18: #{tpu_custom_call.1} parent=11 // pred_check_branch
          %217 = sbr.rel (%p215) target = $region20
        $region19: #{tpu_custom_call.1} parent=11 // pred_region
          _
        $region20: #{tpu_custom_call.1} parent=11 // pred_fallthru
          _
        // Predicated region
        $region21: #{tpu_custom_call.1} parent=11 // pred_check
          %p218 = pneg %p108
        $region22: #{tpu_custom_call.1} parent=11 // pred_check_branch
          %220 = sbr.rel (%p218) target = $region24
        $region23: #{tpu_custom_call.1} parent=11 // pred_region
          _
        $region24: #{tpu_custom_call.1} parent=11 // pred_fallthru
          _
        // Predicated region
        $region25: #{tpu_custom_call.1} parent=11 // pred_check
          %p221 = pneg %p129
        $region26: #{tpu_custom_call.1} parent=11 // pred_check_branch
          %223 = sbr.rel (%p221) target = $region28
        $region27: #{tpu_custom_call.1} parent=11 // pred_region
          _
        $region28: #{tpu_custom_call.1} parent=11 // pred_fallthru
          _
        // Predicated region
        $region29: #{tpu_custom_call.1} parent=11 // pred_check
          %p224 = pneg %p150
        $region30: #{tpu_custom_call.1} parent=11 // pred_check_branch
          %226 = sbr.rel (%p224) target = $region32
        $region31: #{tpu_custom_call.1} parent=11 // pred_region
          _
        $region32: #{tpu_custom_call.1} parent=11 // pred_fallthru
          _
        // Predicated region
        $region33: #{tpu_custom_call.1} parent=11 // pred_check
          %p227 = pneg %p171
        $region34: #{tpu_custom_call.1} parent=11 // pred_check_branch
          %229 = sbr.rel (%p227) target = $region36
        $region35: #{tpu_custom_call.1} parent=11 // pred_region
          _
        $region36: #{tpu_custom_call.1} parent=11 // pred_fallthru
          _
      $region12: #{tpu_custom_call.1} parent=5 // pred_fallthru
        _
      %p230 = scmp.lt.s32.totalorder %s19, 3
      // Predicated region
      $region37: #{tpu_custom_call.1} parent=5 // pred_check
        %p231 = pneg %p230
      $region38: #{tpu_custom_call.1} parent=5 // pred_check_branch
        %233 = sbr.rel (%p231) target = $region40
      $region39: #{tpu_custom_call.1} parent=5 // pred_region
        // Predicated region
        $region41: #{tpu_custom_call.1} parent=39 // pred_check
          %p234 = pneg %p39
        $region42: #{tpu_custom_call.1} parent=39 // pred_check_branch
          %236 = sbr.rel (%p234) target = $region44
        $region43: #{tpu_custom_call.1} parent=39 // pred_region
          %s237 = sand.u32 %s29, 1
          %s238 = scalar_lea.sflag [#allocation3], %s237
          %s239 = sand.u32 %s29, 1
          %s240 = smul.addr %s239, 8
          %s241 = scalar_lea.vmem [#allocation2], %s240
          %s242 = smul.u32 2, %s19
          %244 = vsyncadd %s238, 0
          %s245 = smul.addr %s242, 4
          %s246 = scalar_lea.hbm %s0, %s245
          %s247 = sshll.u32 %s246, 4
          %s248 = int_to_ptr.hbm [resolvable:$true] %s247
          %s249 = sshll.u32 %s241, 4
          %s250 = int_to_ptr.vmem [resolvable:$true] %s249
          %255 = dma.hbm_to_vmem [thread:$0]  %s248, 128, %s250, %s238, 64, 64, 4
        $region44: #{tpu_custom_call.1} parent=39 // pred_fallthru
          _
      $region40: #{tpu_custom_call.1} parent=5 // pred_fallthru
        _
      %p256 = scmp.le.s32.totalorder 1, %s19
      %p257 = scmp.lt.s32.totalorder %s19, 4
      %p258 = pnand %p256, %p257
      %p259 = pneg %p258
      // Predicated region
      $region45: #{tpu_custom_call.1} parent=5 // pred_check
        _
      $region46: #{tpu_custom_call.1} parent=5 // pred_check_branch
        %261 = sbr.rel (%p258) target = $region48
      $region47: #{tpu_custom_call.1} parent=5 // pred_region
        %s262 = ssub.s32 %s19, 1
        %s263 = sand.u32 %s32, 1
        %s264 = scalar_lea.sflag [#allocation3], %s263
        %s265 = sand.u32 %s32, 1
        %s266 = smul.addr %s265, 8
        %s267 = scalar_lea.vmem [#allocation2], %s266
        // Predicated region
        $region49: #{tpu_custom_call.1} parent=47 // pred_check
          %p268 = pneg %p45
        $region50: #{tpu_custom_call.1} parent=47 // pred_check_branch
          %270 = sbr.rel (%p268) target = $region52
        $region51: #{tpu_custom_call.1} parent=47 // pred_region
          %272 = dma.done %s264, 128
        $region52: #{tpu_custom_call.1} parent=47 // pred_fallthru
          _
        %s273 = sand.u32 %s32, 1
        %s274 = scalar_lea.sflag [#allocation3], %s273
        %s275 = sand.u32 %s32, 1
        %s276 = smul.addr %s275, 8
        %s277 = scalar_lea.vmem [#allocation2], %s276
        %p278 = pneg %p45
        %p279 = pneg %p42
        %p280 = pneg %p66
        %p281 = pneg %p63
        %p282 = pneg %p87
        %p283 = pneg %p84
        %p284 = pneg %p108
        %p285 = pneg %p105
        %p286 = pneg %p129
        %p287 = pneg %p126
        %p288 = pneg %p150
        %p289 = pneg %p147
        %p290 = pneg %p171
        %p291 = pneg %p168
        %p292 = pneg %p197
        %p293 = pneg %p194
        %s294 = sand.u32 %s184, 1
        %s295 = scalar_lea.sflag [#allocation4], %s294
        %s296 = sand.u32 %s184, 1
        %s297 = smul.addr %s296, 16
        %s298 = scalar_lea.vmem [#allocation5], %s297
        %s299 = smul.u32 2, %s24
        %s300 = smul.u32 2, %s24
        %v302 = vld [vmem:[%s267] sm:$0xf]
        %v303 = vld [vmem:[%s267 + $0x4] sm:$0xf]
        %v304 = vld [vmem:[%s1] sm:$0xf]
        %v305 = vld [vmem:[%s1 + $0x4] sm:$0xf]
        %v306 = vld [vmem:[%s1 + $0x8] sm:$0xf]
        %v307 = vld [vmem:[%s1 + $0xc] sm:$0xf]
        %v308 = vld [vmem:[%s1 + $0x10] sm:$0xf]
        %v309 = vld [vmem:[%s1 + $0x14] sm:$0xf]
        %v310 = vld [vmem:[%s1 + $0x18] sm:$0xf]
        %v311 = vld [vmem:[%s1 + $0x1c] sm:$0xf]
        %v312 = vld [vmem:[%s2] sm:$0x1]
        %v314 = vperm.slane %v312, 0
        %v318 = vunpack.c.l.b16 %v302
        %v319 = vunpack.c.l.b16 %v303
        %v320 = vpack.c.b16 %v319, %v318
        %v329 = vunpack.c.l.b16 %v304
        %v330 = vunpack.c.l.b16 %v305
        %v331 = vunpack.c.l.b16 %v306
        %v332 = vunpack.c.l.b16 %v307
        %v333 = vunpack.c.l.b16 %v308
        %v334 = vunpack.c.l.b16 %v309
        %v335 = vunpack.c.l.b16 %v310
        %v336 = vunpack.c.l.b16 %v311
        %v337 = vpack.c.b16 %v330, %v329
        %v338 = vpack.c.b16 %v332, %v331
        %v339 = vpack.c.b16 %v334, %v333
        %v340 = vpack.c.b16 %v336, %v335
        %vm345 = vcmask 523264
        %v347 = vsel %vm345, %v320, 0
        %349 = vmatpush.bf16.msra.mxu0 0
        %350 = vmatpush.bf16.msra.mxu0 0
        %351 = vmatpush.bf16.msra.mxu0 0
        %352 = vmatpush.bf16.msra.mxu0 0
        %353 = vmatpush.bf16.msra.mxu0 %v340
        %354 = vmatpush.bf16.msra.mxu0 %v339
        %355 = vmatpush.bf16.msra.mxu0 %v338
        %356 = vmatpush.bf16.msra.mxu0 %v337
        %357 = vmatmul.bf16.gmra.mxu0 %v347
        %v358 = vpop.f32.mrf.mxu0
        %v359 = vadd.f32 %v314, %v358
        %v360 = vpop.f32.mrf.mxu0
        %v361 = vadd.f32 %v314, %v360
        %362 = vdwg.mxu0
        %v363 = vmax.f32 %v359, 0.0
        %v364 = vmax.f32 %v361, 0.0
        %v365 = vpack.c.bf16 %v364, %v363
        %v366 = vld [vmem:[%s3] sm:$0xf]
        %v367 = vld [vmem:[%s3 + $0x4] sm:$0xf]
        %v368 = vld [vmem:[%s3 + $0x8] sm:$0xf]
        %v369 = vld [vmem:[%s3 + $0xc] sm:$0xf]
        %v370 = vld [vmem:[%s3 + $0x10] sm:$0xf]
        %v371 = vld [vmem:[%s3 + $0x14] sm:$0xf]
        %v372 = vld [vmem:[%s3 + $0x18] sm:$0xf]
        %v373 = vld [vmem:[%s3 + $0x1c] sm:$0xf]
        %v374 = vld [vmem:[%s3 + $0x20] sm:$0xf]
        %v375 = vld [vmem:[%s3 + $0x24] sm:$0xf]
        %v376 = vld [vmem:[%s3 + $0x28] sm:$0xf]
        %v377 = vld [vmem:[%s3 + $0x2c] sm:$0xf]
        %v378 = vld [vmem:[%s3 + $0x30] sm:$0xf]
        %v379 = vld [vmem:[%s3 + $0x34] sm:$0xf]
        %v380 = vld [vmem:[%s3 + $0x38] sm:$0xf]
        %v381 = vld [vmem:[%s3 + $0x3c] sm:$0xf]
        %v382 = vld [vmem:[%s4] sm:$0x1]
        %v384 = vperm.slane %v382, 0
        %v402 = vunpack.c.l.b16 %v366
        %v403 = vunpack.c.l.b16 %v367
        %v404 = vunpack.c.l.b16 %v368
        %v405 = vunpack.c.l.b16 %v369
        %v406 = vunpack.c.l.b16 %v370
        %v407 = vunpack.c.l.b16 %v371
        %v408 = vunpack.c.l.b16 %v372
        %v409 = vunpack.c.l.b16 %v373
        %v410 = vunpack.c.l.b16 %v374
        %v411 = vunpack.c.l.b16 %v375
        %v412 = vunpack.c.l.b16 %v376
        %v413 = vunpack.c.l.b16 %v377
        %v414 = vunpack.c.l.b16 %v378
        %v415 = vunpack.c.l.b16 %v379
        %v416 = vunpack.c.l.b16 %v380
        %v417 = vunpack.c.l.b16 %v381
        %v418 = vpack.c.b16 %v403, %v402
        %v419 = vpack.c.b16 %v405, %v404
        %v420 = vpack.c.b16 %v407, %v406
        %v421 = vpack.c.b16 %v409, %v408
        %v422 = vpack.c.b16 %v411, %v410
        %v423 = vpack.c.b16 %v413, %v412
        %v424 = vpack.c.b16 %v415, %v414
        %v425 = vpack.c.b16 %v417, %v416
        %434 = vmatpush.bf16.msra.mxu0 %v425
        %435 = vmatpush.bf16.msra.mxu0 %v424
        %436 = vmatpush.bf16.msra.mxu0 %v423
        %437 = vmatpush.bf16.msra.mxu0 %v422
        %438 = vmatpush.bf16.msra.mxu0 %v421
        %439 = vmatpush.bf16.msra.mxu0 %v420
        %440 = vmatpush.bf16.msra.mxu0 %v419
        %441 = vmatpush.bf16.msra.mxu0 %v418
        %442 = vmatmul.bf16.gmra.mxu0 %v365
        %v443 = vpop.f32.mrf.mxu0
        %v444 = vadd.f32 %v384, %v443
        %v445 = vpop.f32.mrf.mxu0
        %v446 = vadd.f32 %v384, %v445
        %447 = vdwg.mxu0
        %v448 = vmax.f32 %v444, 0.0
        %v449 = vmax.f32 %v446, 0.0
        %v450 = vpack.c.bf16 %v449, %v448
        %v451 = vld [vmem:[%s5] sm:$0xf]
        %v452 = vld [vmem:[%s5 + $0x4] sm:$0xf]
        %v453 = vld [vmem:[%s5 + $0x8] sm:$0xf]
        %v454 = vld [vmem:[%s5 + $0xc] sm:$0xf]
        %v455 = vld [vmem:[%s5 + $0x10] sm:$0xf]
        %v456 = vld [vmem:[%s5 + $0x14] sm:$0xf]
        %v457 = vld [vmem:[%s5 + $0x18] sm:$0xf]
        %v458 = vld [vmem:[%s5 + $0x1c] sm:$0xf]
        %v459 = vld [vmem:[%s5 + $0x20] sm:$0xf]
        %v460 = vld [vmem:[%s5 + $0x24] sm:$0xf]
        %v461 = vld [vmem:[%s5 + $0x28] sm:$0xf]
        %v462 = vld [vmem:[%s5 + $0x2c] sm:$0xf]
        %v463 = vld [vmem:[%s5 + $0x30] sm:$0xf]
        %v464 = vld [vmem:[%s5 + $0x34] sm:$0xf]
        %v465 = vld [vmem:[%s5 + $0x38] sm:$0xf]
        %v466 = vld [vmem:[%s5 + $0x3c] sm:$0xf]
        %v467 = vld [vmem:[%s6] sm:$0x1]
        %v469 = vperm.slane %v467, 0
        %v487 = vunpack.c.l.b16 %v451
        %v488 = vunpack.c.l.b16 %v452
        %v489 = vunpack.c.l.b16 %v453
        %v490 = vunpack.c.l.b16 %v454
        %v491 = vunpack.c.l.b16 %v455
        %v492 = vunpack.c.l.b16 %v456
        %v493 = vunpack.c.l.b16 %v457
        %v494 = vunpack.c.l.b16 %v458
        %v495 = vunpack.c.l.b16 %v459
        %v496 = vunpack.c.l.b16 %v460
        %v497 = vunpack.c.l.b16 %v461
        %v498 = vunpack.c.l.b16 %v462
        %v499 = vunpack.c.l.b16 %v463
        %v500 = vunpack.c.l.b16 %v464
        %v501 = vunpack.c.l.b16 %v465
        %v502 = vunpack.c.l.b16 %v466
        %v503 = vpack.c.b16 %v488, %v487
        %v504 = vpack.c.b16 %v490, %v489
        %v505 = vpack.c.b16 %v492, %v491
        %v506 = vpack.c.b16 %v494, %v493
        %v507 = vpack.c.b16 %v496, %v495
        %v508 = vpack.c.b16 %v498, %v497
        %v509 = vpack.c.b16 %v500, %v499
        %v510 = vpack.c.b16 %v502, %v501
        %519 = vmatpush.bf16.msra.mxu0 %v510
        %520 = vmatpush.bf16.msra.mxu0 %v509
        %521 = vmatpush.bf16.msra.mxu0 %v508
        %522 = vmatpush.bf16.msra.mxu0 %v507
        %523 = vmatpush.bf16.msra.mxu0 %v506
        %524 = vmatpush.bf16.msra.mxu0 %v505
        %525 = vmatpush.bf16.msra.mxu0 %v504
        %526 = vmatpush.bf16.msra.mxu0 %v503
        %527 = vmatmul.bf16.gmra.mxu0 %v450
        %v528 = vpop.f32.mrf.mxu0
        %v529 = vadd.f32 %v469, %v528
        %v530 = vpop.f32.mrf.mxu0
        %v531 = vadd.f32 %v469, %v530
        %532 = vdwg.mxu0
        %533 = vst.msk [vmem:[%s298] sm:$0xff] %vm345, %v529
        %534 = vst.msk [vmem:[%s298 + $0x8] sm:$0xff] %vm345, %v531
        %s535 = sand.u32 %s184, 1
        %s536 = scalar_lea.sflag [#allocation4], %s535
        %s537 = sand.u32 %s184, 1
        %s538 = smul.addr %s537, 16
        %s539 = scalar_lea.vmem [#allocation5], %s538
        // Predicated region
        $region53: #{tpu_custom_call.1} parent=47 // pred_check
          %p540 = pneg %p194
        $region54: #{tpu_custom_call.1} parent=47 // pred_check_branch
          %542 = sbr.rel (%p540) target = $region56
        $region55: #{tpu_custom_call.1} parent=47 // pred_region
          %s543 = smul.u32 2, %s24
          %545 = vsyncadd %s536, 0
          %s546 = smul.addr %s543, 8
          %s547 = scalar_lea.hbm %s7, %s546
          %s548 = sshll.u32 %s539, 4
          %s549 = int_to_ptr.vmem [resolvable:$true] %s548
          %s550 = sshll.u32 %s547, 4
          %s551 = int_to_ptr.hbm [resolvable:$true] %s550
          %556 = dma.vmem_to_hbm [thread:$0]  %s549, 256, %s551, %s536, 128, 128, 8
        $region56: #{tpu_custom_call.1} parent=47 // pred_fallthru
          _
      $region48: #{tpu_custom_call.1} parent=5 // pred_fallthru
        _
      %p557 = scmp.le.s32.totalorder 2, %s19
      // Predicated region
      $region57: #{tpu_custom_call.1} parent=5 // pred_check
        %p558 = pneg %p557
      $region58: #{tpu_custom_call.1} parent=5 // pred_check_branch
        %560 = sbr.rel (%p558) target = $region60
      $region59: #{tpu_custom_call.1} parent=5 // pred_region
        %s561 = ssub.s32 %s19, 2
        // Predicated region
        $region61: #{tpu_custom_call.1} parent=59 // pred_check
          %p562 = pneg %p200
        $region62: #{tpu_custom_call.1} parent=59 // pred_check_branch
          %564 = sbr.rel (%p562) target = $region64
        $region63: #{tpu_custom_call.1} parent=59 // pred_region
          %s565 = sand.u32 %s185, 1
          %s566 = scalar_lea.sflag [#allocation4], %s565
          %s567 = sand.u32 %s185, 1
          %s568 = smul.addr %s567, 16
          %s569 = scalar_lea.vmem [#allocation5], %s568
          %571 = dma.done %s566, 256
        $region64: #{tpu_custom_call.1} parent=59 // pred_fallthru
          _
      $region60: #{tpu_custom_call.1} parent=5 // pred_fallthru
        _
    $region6: #{tpu_custom_call.1} parent=1 // loop_footer
      %s23 = sadd.s32 1, %s19
    $region7: #{tpu_custom_call.1} parent=1 // loop_footer_branch
      %18 = sbr.rel target = $region3
    $region8: #{tpu_custom_call.1} parent=1 // loop_exit
      _
    %572 = vsyncpa [#allocation3], 1
    %s573 = scalar_lea.sflag [#allocation3], 1
    %574 = vsyncpa %s573, 1
    %575 = vsyncpa [#allocation4], 1
    %s576 = scalar_lea.sflag [#allocation4], 1
    %577 = vsyncpa %s576, 1

</llo_original>
